<compile_context>
chip_gen: v6e
topology: v6e:2x2x1
jax: 0.10.0
libtpu: 0.0.40
codegen_flags: <defaults>
</compile_context>

<pallas_src>
import functools

import jax
import jax.numpy as jnp
from jax.experimental import pallas as pl
from jax.experimental.pallas import tpu as pltpu


def _round_up(x, m):
    return ((x + m - 1) // m) * m


def _sigmoid1(x):
    # One EUP transcendental (tanh) instead of exp + reciprocal/divide.
    return 0.5 * jnp.tanh(0.5 * x) + 0.5


def _ncdm_kernel(x_ref, w1_ref, b1_ref, w2_ref, b2_ref, w3_ref, b3_ref,
                 out_ref, *, act_dtype):
    # int_fc: PosLinear -> sigmoid -> (dropout=id) -> PosLinear -> sigmoid
    #         -> (dropout=id) -> PosLinear -> sigmoid
    # Weights are already |W|.T (PosLinear transform 2*relu(-W)+W == |W| is
    # hoisted to the wrapper, computed once, not per grid step).
    x = x_ref[...]                                                    # (TB, K) bf16

    a1 = jnp.dot(x, w1_ref[...], preferred_element_type=jnp.float32) + b1_ref[...]
    h1 = _sigmoid1(a1.astype(act_dtype))                              # (TB, 512)

    a2 = jnp.dot(h1.astype(jnp.bfloat16), w2_ref[...],
                 preferred_element_type=jnp.float32) + b2_ref[...]
    h2 = _sigmoid1(a2.astype(act_dtype)).astype(jnp.float32)          # (TB, 256)

    # Final layer has N=1: do it on the VPU + XLU instead of wasting the MXU.
    logit = jnp.sum(h2 * w3_ref[...], axis=-1, keepdims=True) + b3_ref[0]
    out_ref[...] = _sigmoid1(logit).astype(out_ref.dtype)             # (TB, 1)


def embed_ncdm_forward(params, user, item, i2k, *,
                       tile_b=2048,
                       vmem_limit_bytes=48 * 1024 * 1024,
                       act_dtype=jnp.float32):
    """Forward pass of EmbedNCDMNet. Returns shape (B,).

    act_dtype: float32 is safe on every generation; bfloat16 is faster on
    v6e/v7x (native bf16 EUP/VPU) and should not be used on v5e.
    """
    B, K = i2k.shape

    # Embedding row gather + input sigmoids + interaction term. XLA fuses
    # these with the gather itself; the Pallas kernel then streams exactly one
    # (B, K) per-sample operand instead of four.
    stat_emb = jax.nn.sigmoid(params["theta_emb"][user].astype(jnp.float32))
    k_difficulty = jax.nn.sigmoid(params["kd_emb"][item].astype(jnp.float32))
    e_difficulty = jax.nn.sigmoid(params["ed_emb"][item].astype(jnp.float32))
    x = (e_difficulty * (stat_emb - k_difficulty)
         * i2k.astype(jnp.float32)).astype(jnp.bfloat16)              # (B, K)

    # Batch tiling. Keep >= 2 grid steps when the batch allows it so the
    # "parallel" axis can shard across both TensorCores on v7x.
    B8 = _round_up(B, 8)
    tb = min(tile_b, B8)
    if B8 > 8 and tb >= B8:
        tb = _round_up((B8 + 1) // 2, 8)
    num_tiles = -(-B8 // tb)
    B_pad = num_tiles * tb

    x_p = jnp.pad(x, ((0, B_pad - B), (0, 0)))

    # PosLinear weight transform 2*relu(-W)+W == |W|; hoist |.| + transpose here.
    w1 = jnp.abs(params["w1"]).T.astype(jnp.bfloat16)                 # (K, 512), no padded rows
    w2 = jnp.abs(params["w2"]).T.astype(jnp.bfloat16)                 # (512, 256)
    w3 = jnp.abs(params["w3"]).astype(jnp.float32)                    # (1, 256)
    b1 = params["b1"].reshape(1, -1).astype(jnp.float32)              # (1, 512)
    b2 = params["b2"].reshape(1, -1).astype(jnp.float32)              # (1, 256)
    b3 = params["b3"].reshape(-1).astype(jnp.float32)                 # (1,) -> SMEM scalar

    L1, L2 = w1.shape[1], w2.shape[1]

    def batch_spec(shape):
        return pl.BlockSpec(shape, lambda i: (i, 0))

    def const_spec(shape):
        return pl.BlockSpec(shape, lambda i: (0, 0))

    out = pl.pallas_call(
        functools.partial(_ncdm_kernel, act_dtype=act_dtype),
        out_shape=jax.ShapeDtypeStruct((B_pad, 1), jnp.float32),
        grid=(num_tiles,),
        in_specs=[
            batch_spec((tb, K)),      # x       (streamed; last dim == full K)
            const_spec((K, L1)),      # |w1|.T  (VMEM-resident across grid)
            const_spec((1, L1)),      # b1
            const_spec((L1, L2)),     # |w2|.T
            const_spec((1, L2)),      # b2
            const_spec((1, L2)),      # |w3| row
            pl.BlockSpec(memory_space=pltpu.MemorySpace.SMEM),  # b3 scalar
        ],
        out_specs=pl.BlockSpec((tb, 1), lambda i: (i, 0)),
        compiler_params=pltpu.CompilerParams(
            dimension_semantics=("parallel",),
            vmem_limit_bytes=vmem_limit_bytes,
        ),
    )(x_p, w1, b1, w2, b2, w3, b3)

    return out[:B, 0]   # output_1.view(-1)


def _forward_ref(params, user, item, i2k):
    """Pure-JAX f32 reference (mirrors the PyTorch module in eval mode)."""
    stat = jax.nn.sigmoid(params["theta_emb"][user])
    kd = jax.nn.sigmoid(params["kd_emb"][item])
    ed = jax.nn.sigmoid(params["ed_emb"][item])
    x = ed * (stat - kd) * i2k
    h1 = jax.nn.sigmoid(x @ jnp.abs(params["w1"]).T + params["b1"])
    h2 = jax.nn.sigmoid(h1 @ jnp.abs(params["w2"]).T + params["b2"])
    o = jax.nn.sigmoid(h2 @ jnp.abs(params["w3"]).T + params["b3"])
    return o.reshape(-1)


def init_params(key, user_num, item_num, know_n, len1=512, len2=256):
    ks = jax.random.split(key, 9)
    s = 0.05
    return {
        "theta_emb": jax.random.normal(ks[0], (user_num, know_n), jnp.float32),
        "kd_emb":    jax.random.normal(ks[1], (item_num, know_n), jnp.float32),
        "ed_emb":    jax.random.normal(ks[2], (item_num, know_n), jnp.float32),
        "w1": s * jax.random.normal(ks[3], (len1, know_n), jnp.float32),
        "b1": s * jax.random.normal(ks[4], (len1,), jnp.float32),
        "w2": s * jax.random.normal(ks[5], (len2, len1), jnp.float32),
        "b2": s * jax.random.normal(ks[6], (len2,), jnp.float32),
        "w3": s * jax.random.normal(ks[7], (1, len2), jnp.float32),
        "b3": s * jax.random.normal(ks[8], (1,), jnp.float32),
    }


if __name__ == "__main__":
    user_num, item_num, know_n = 16, 16, 32
    batch = 8

    key = jax.random.PRNGKey(0)
    kp, ku, ki, kq = jax.random.split(key, 4)

    params = init_params(kp, user_num, item_num, know_n)
    user = jax.random.randint(ku, (batch,), 0, user_num, dtype=jnp.int32)
    item = jax.random.randint(ki, (batch,), 0, item_num, dtype=jnp.int32)
    # i2k: binary item-to-knowledge relevance rows for each sampled item
    i2k = (jax.random.uniform(kq, (batch, know_n)) < 0.3).astype(jnp.float32)

    out = embed_ncdm_forward(params, user, item, i2k)
    out = jax.block_until_ready(out)
    assert out.shape == (batch,)

    ref = _forward_ref(params, user, item, i2k)
    assert jnp.allclose(out, ref, atol=2e-2, rtol=2e-2), (out, ref)

    print("KERNEL_OK")
</pallas_src>

<mosaic_0001>
module attributes {stable_mosaic.version = 11 : i64} {
  func.func @_ncdm_kernel(%arg0: i32, %arg1: memref<8x32xbf16, #tpu.memory_space<vmem>>, %arg2: memref<32x512xbf16, #tpu.memory_space<vmem>>, %arg3: memref<1x512xf32, #tpu.memory_space<vmem>>, %arg4: memref<512x256xbf16, #tpu.memory_space<vmem>>, %arg5: memref<1x256xf32, #tpu.memory_space<vmem>>, %arg6: memref<1x256xf32, #tpu.memory_space<vmem>>, %arg7: memref<1xf32, #tpu.memory_space<smem>>, %arg8: memref<8x1xf32, #tpu.memory_space<vmem>>) attributes {dimension_semantics = [#tpu.dimension_semantics<parallel>], iteration_bounds = array<i64: 1>, scalar_prefetch = 0 : i64, scratch_operands = 0 : i64, tpu.core_type = #tpu.core_type<tc>, window_params = [{transform_indices = @transform_0, window_bounds = array<i64: 8, 32>}, {pipeline_mode = #tpu.pipeline_mode<synchronous>, transform_indices = @transform_1, window_bounds = array<i64: 32, 512>}, {pipeline_mode = #tpu.pipeline_mode<synchronous>, transform_indices = @transform_2, window_bounds = array<i64: 1, 512>}, {pipeline_mode = #tpu.pipeline_mode<synchronous>, transform_indices = @transform_3, window_bounds = array<i64: 512, 256>}, {pipeline_mode = #tpu.pipeline_mode<synchronous>, transform_indices = @transform_4, window_bounds = array<i64: 1, 256>}, {pipeline_mode = #tpu.pipeline_mode<synchronous>, transform_indices = @transform_5, window_bounds = array<i64: 1, 256>}, {transform_indices = @transform_6, window_bounds = array<i64: 1>}, {transform_indices = @transform_7, window_bounds = array<i64: 8, 1>}]} {
    %c0 = arith.constant 0 : index
    %c0_0 = arith.constant 0 : index
    %0 = vector.load %arg1[%c0, %c0_0] : memref<8x32xbf16, #tpu.memory_space<vmem>>, vector<8x32xbf16>
    %c0_1 = arith.constant 0 : index
    %c0_2 = arith.constant 0 : index
    %1 = vector.load %arg2[%c0_1, %c0_2] : memref<32x512xbf16, #tpu.memory_space<vmem>>, vector<32x512xbf16>
    %cst = arith.constant dense<0.000000e+00> : vector<8x512xf32>
    %2 = tpu.matmul %0, %1, %cst {dimension_numbers = #tpu.dot_dimension_numbers<[1], [0], [0], [1], [0, 0, 1, 1], [], []>} : vector<8x32xbf16>, vector<32x512xbf16>, vector<8x512xf32> -> vector<8x512xf32>
    %c0_3 = arith.constant 0 : index
    %c0_4 = arith.constant 0 : index
    %3 = vector.load %arg3[%c0_3, %c0_4] : memref<1x512xf32, #tpu.memory_space<vmem>>, vector<1x512xf32>
    %4 = vector.broadcast %3 : vector<1x512xf32> to vector<8x512xf32>
    %5 = arith.addf %2, %4 : vector<8x512xf32>
    %cst_5 = arith.constant 5.000000e-01 : f32
    %6 = vector.broadcast %cst_5 : f32 to vector<8x512xf32>
    %7 = arith.mulf %6, %5 : vector<8x512xf32>
    %8 = math.tanh %7 : vector<8x512xf32>
    %cst_6 = arith.constant 5.000000e-01 : f32
    %9 = vector.broadcast %cst_6 : f32 to vector<8x512xf32>
    %10 = arith.mulf %9, %8 : vector<8x512xf32>
    %cst_7 = arith.constant 5.000000e-01 : f32
    %11 = vector.broadcast %cst_7 : f32 to vector<8x512xf32>
    %12 = arith.addf %10, %11 : vector<8x512xf32>
    %13 = arith.truncf %12 : vector<8x512xf32> to vector<8x512xbf16>
    %c0_8 = arith.constant 0 : index
    %c0_9 = arith.constant 0 : index
    %14 = vector.load %arg4[%c0_8, %c0_9] : memref<512x256xbf16, #tpu.memory_space<vmem>>, vector<512x256xbf16>
    %cst_10 = arith.constant dense<0.000000e+00> : vector<8x256xf32>
    %15 = tpu.matmul %13, %14, %cst_10 {dimension_numbers = #tpu.dot_dimension_numbers<[1], [0], [0], [1], [0, 0, 1, 1], [], []>} : vector<8x512xbf16>, vector<512x256xbf16>, vector<8x256xf32> -> vector<8x256xf32>
    %c0_11 = arith.constant 0 : index
    %c0_12 = arith.constant 0 : index
    %16 = vector.load %arg5[%c0_11, %c0_12] : memref<1x256xf32, #tpu.memory_space<vmem>>, vector<1x256xf32>
    %17 = vector.broadcast %16 : vector<1x256xf32> to vector<8x256xf32>
    %18 = arith.addf %15, %17 : vector<8x256xf32>
    %cst_13 = arith.constant 5.000000e-01 : f32
    %19 = vector.broadcast %cst_13 : f32 to vector<8x256xf32>
    %20 = arith.mulf %19, %18 : vector<8x256xf32>
    %21 = math.tanh %20 : vector<8x256xf32>
    %cst_14 = arith.constant 5.000000e-01 : f32
    %22 = vector.broadcast %cst_14 : f32 to vector<8x256xf32>
    %23 = arith.mulf %22, %21 : vector<8x256xf32>
    %cst_15 = arith.constant 5.000000e-01 : f32
    %24 = vector.broadcast %cst_15 : f32 to vector<8x256xf32>
    %25 = arith.addf %23, %24 : vector<8x256xf32>
    %c0_16 = arith.constant 0 : index
    %c0_17 = arith.constant 0 : index
    %26 = vector.load %arg6[%c0_16, %c0_17] : memref<1x256xf32, #tpu.memory_space<vmem>>, vector<1x256xf32>
    %27 = vector.broadcast %26 : vector<1x256xf32> to vector<8x256xf32>
    %28 = arith.mulf %25, %27 : vector<8x256xf32>
    %cst_18 = arith.constant dense<0.000000e+00> : vector<8xf32>
    %29 = vector.multi_reduction <add>, %28, %cst_18 [1] : vector<8x256xf32> to vector<8xf32>
    %30 = vector.shape_cast %29 : vector<8xf32> to vector<8x1xf32>
    %c0_19 = arith.constant 0 : index
    %31 = memref.load %arg7[%c0_19] : memref<1xf32, #tpu.memory_space<smem>>
    %32 = vector.broadcast %31 : f32 to vector<8x1xf32>
    %33 = arith.addf %30, %32 : vector<8x1xf32>
    %cst_20 = arith.constant 5.000000e-01 : f32
    %34 = vector.broadcast %cst_20 : f32 to vector<8x1xf32>
    %35 = arith.mulf %34, %33 : vector<8x1xf32>
    %36 = math.tanh %35 : vector<8x1xf32>
    %cst_21 = arith.constant 5.000000e-01 : f32
    %37 = vector.broadcast %cst_21 : f32 to vector<8x1xf32>
    %38 = arith.mulf %37, %36 : vector<8x1xf32>
    %cst_22 = arith.constant 5.000000e-01 : f32
    %39 = vector.broadcast %cst_22 : f32 to vector<8x1xf32>
    %40 = arith.addf %38, %39 : vector<8x1xf32>
    %c0_23 = arith.constant 0 : index
    %c0_24 = arith.constant 0 : index
    %41 = vector.load %arg8[%c0_23, %c0_24] : memref<8x1xf32, #tpu.memory_space<vmem>>, vector<8x1xf32>
    tpu.vector_store %arg8[%c0_23, %c0_24], %40 {strides = array<i32>} : memref<8x1xf32, #tpu.memory_space<vmem>>, vector<8x1xf32>,
    return
  }
  func.func @transform_0(%arg0: i32) -> (i32, i32) {
    %c0_i32 = arith.constant 0 : i32
    %c0_i32_0 = arith.constant 0 : i32
    return %arg0, %c0_i32 : i32, i32
  }
  func.func @transform_1(%arg0: i32) -> (i32, i32) {
    %c0_i32 = arith.constant 0 : i32
    %c0_i32_0 = arith.constant 0 : i32
    %c0_i32_1 = arith.constant 0 : i32
    return %c0_i32, %c0_i32_0 : i32, i32
  }
  func.func @transform_2(%arg0: i32) -> (i32, i32) {
    %c0_i32 = arith.constant 0 : i32
    %c0_i32_0 = arith.constant 0 : i32
    %c0_i32_1 = arith.constant 0 : i32
    return %c0_i32, %c0_i32_0 : i32, i32
  }
  func.func @transform_3(%arg0: i32) -> (i32, i32) {
    %c0_i32 = arith.constant 0 : i32
    %c0_i32_0 = arith.constant 0 : i32
    %c0_i32_1 = arith.constant 0 : i32
    return %c0_i32, %c0_i32_0 : i32, i32
  }
  func.func @transform_4(%arg0: i32) -> (i32, i32) {
    %c0_i32 = arith.constant 0 : i32
    %c0_i32_0 = arith.constant 0 : i32
    %c0_i32_1 = arith.constant 0 : i32
    return %c0_i32, %c0_i32_0 : i32, i32
  }
  func.func @transform_5(%arg0: i32) -> (i32, i32) {
    %c0_i32 = arith.constant 0 : i32
    %c0_i32_0 = arith.constant 0 : i32
    %c0_i32_1 = arith.constant 0 : i32
    return %c0_i32, %c0_i32_0 : i32, i32
  }
  func.func @transform_6(%arg0: i32) -> i32 {
    %c0_i32 = arith.constant 0 : i32
    %c0_i32_0 = arith.constant 0 : i32
    return %c0_i32 : i32
  }
  func.func @transform_7(%arg0: i32) -> (i32, i32) {
    %c0_i32 = arith.constant 0 : i32
    %c0_i32_0 = arith.constant 0 : i32
    return %arg0, %c0_i32 : i32, i32
  }
}

</mosaic_0001>

<llo_original>
// kernel: tpu_custom_call.1
$region0: #{tpu_custom_call.1}
  #allocation0 [shape = 'u32[]', space=smem, size = 0x4, offset = 0x4, fixed_abs, tag = 'smem constant byte address 0x4 - core index']
  #allocation1 [shape = 'u32[144,128]{1,0:T(1,128)}', space=vmem, size = 0x12000, scoped, tag = 'internal scratch']
  #allocation2 [shape = 'f32[1]{0:T(128)S(6)}', space=smem, size = 0x200, scoped, tag = 'scoped memory for tpu_custom_call.1']
  %s0 = inlined_call_operand.hbm [shape: bf16[8,32], index: 0, kind: input, shape index: {}]
  %s1 = inlined_call_operand.hbm [shape: bf16[32,512], index: 1, kind: input, shape index: {}]
  %s2 = inlined_call_operand.vmem [shape: f32[1,512], index: 2, kind: input, shape index: {}]
  %s3 = inlined_call_operand.hbm [shape: bf16[512,256], index: 3, kind: input, shape index: {}]
  %s4 = inlined_call_operand.vmem [shape: f32[1,256], index: 4, kind: input, shape index: {}]
  %s5 = inlined_call_operand.vmem [shape: f32[1,256], index: 5, kind: input, shape index: {}]
  %s6 = inlined_call_operand.<no memory space> [shape: f32[1], index: 6, kind: input, shape index: {}]
  %s7 = inlined_call_operand.vmem [shape: f32[8,1], index: 7, kind: output, shape index: {}]
  %s8 = sld [smem:[#allocation0]]
  $region50: #{tpu_custom_call.1} parent=0
    _
  %s10 = ssub.s32 1, %s8
  %s11 = scalar_select 0, %s10, %s8
  %12 = sst [smem:[#allocation2]] %s6
  $region1: #{tpu_custom_call.1} parent=0
    #allocation3 [shape = 'u8[2048]{0}', space=vmem, size = 0x800, scoped, tag = 'input window, operand 0, single buffered']
    #allocation4 [shape = 's32[1]{0}', space=sflag, size = 0x4, scoped, tag = 'scoped memory for tpu_custom_call.1']
    #allocation5 [shape = 'u8[32768]{0}', space=vmem, size = 0x8000, scoped, tag = 'input window, operand 1, single buffered']
    #allocation6 [shape = 's32[1]{0}', space=sflag, size = 0x4, scoped, tag = 'scoped memory for tpu_custom_call.1']
    #allocation7 [shape = 'u8[262144]{0}', space=vmem, size = 0x40000, scoped, tag = 'input window, operand 3, single buffered']
    %13 = vsyncpa [#allocation4], 0
    %14 = vsyncpa [#allocation6], 0
    // Predicated region
    $region2: #{tpu_custom_call.1} parent=1 // pred_check
      _
    $region3: #{tpu_custom_call.1} parent=1 // pred_check_branch
      %16 = sbr.rel (0) target = $region5
    $region4: #{tpu_custom_call.1} parent=1 // pred_region
      %s18 = ssub.s32 64, 64
      %19 = vsyncadd [#allocation4], %s18
      %s21 = sshll.u32 [#allocation3], 4
      %s22 = int_to_ptr.vmem [resolvable:$true] %s21
      %24 = dma.hbm_to_vmem [thread:$0]  %s0, 64, %s22, [#allocation4]
    $region5: #{tpu_custom_call.1} parent=1 // pred_fallthru
      _
    // Predicated region
    $region6: #{tpu_custom_call.1} parent=1 // pred_check
      _
    $region7: #{tpu_custom_call.1} parent=1 // pred_check_branch
      %26 = sbr.rel (0) target = $region9
    $region8: #{tpu_custom_call.1} parent=1 // pred_region
      %s28 = ssub.s32 1024, 1024
      %29 = vsyncadd [#allocation6], %s28
      %s30 = sshll.u32 [#allocation5], 4
      %s31 = int_to_ptr.vmem [resolvable:$true] %s30
      %36 = dma.hbm_to_vmem [thread:$0]  %s1, 1024, %s31, [#allocation6], 256, 256, 16
    $region9: #{tpu_custom_call.1} parent=1 // pred_fallthru
      _
    // Predicated region
    $region10: #{tpu_custom_call.1} parent=1 // pred_check
      _
    $region11: #{tpu_custom_call.1} parent=1 // pred_check_branch
      %38 = sbr.rel (0) target = $region13
    $region12: #{tpu_custom_call.1} parent=1 // pred_region
      _
    $region13: #{tpu_custom_call.1} parent=1 // pred_fallthru
      _
    // Predicated region
    $region14: #{tpu_custom_call.1} parent=1 // pred_check
      _
    $region15: #{tpu_custom_call.1} parent=1 // pred_check_branch
      %40 = sbr.rel (0) target = $region17
    $region16: #{tpu_custom_call.1} parent=1 // pred_region
      %s42 = ssub.s32 8192, 8192
      %43 = vsyncadd [#allocation6], %s42
      %s44 = sshll.u32 [#allocation7], 4
      %s45 = int_to_ptr.vmem [resolvable:$true] %s44
      %50 = dma.hbm_to_vmem [thread:$0]  %s3, 8192, %s45, [#allocation6], 128, 128, 8
    $region17: #{tpu_custom_call.1} parent=1 // pred_fallthru
      _
    // Predicated region
    $region18: #{tpu_custom_call.1} parent=1 // pred_check
      _
    $region19: #{tpu_custom_call.1} parent=1 // pred_check_branch
      %52 = sbr.rel (0) target = $region21
    $region20: #{tpu_custom_call.1} parent=1 // pred_region
      _
    $region21: #{tpu_custom_call.1} parent=1 // pred_fallthru
      _
    // Predicated region
    $region22: #{tpu_custom_call.1} parent=1 // pred_check
      _
    $region23: #{tpu_custom_call.1} parent=1 // pred_check_branch
      %54 = sbr.rel (0) target = $region25
    $region24: #{tpu_custom_call.1} parent=1 // pred_region
      _
    $region25: #{tpu_custom_call.1} parent=1 // pred_fallthru
      _
    // Predicated region
    $region26: #{tpu_custom_call.1} parent=1 // pred_check
      _
    $region27: #{tpu_custom_call.1} parent=1 // pred_check_branch
      %56 = sbr.rel (0) target = $region29
    $region28: #{tpu_custom_call.1} parent=1 // pred_region
      _
    $region29: #{tpu_custom_call.1} parent=1 // pred_fallthru
      _
    // Predicated region
    $region30: #{tpu_custom_call.1} parent=1 // pred_check
      _
    $region31: #{tpu_custom_call.1} parent=1 // pred_check_branch
      %58 = sbr.rel (0) target = $region33
    $region32: #{tpu_custom_call.1} parent=1 // pred_region
      %59 = dma.done [#allocation4], 64
    $region33: #{tpu_custom_call.1} parent=1 // pred_fallthru
      _
    // Predicated region
    $region34: #{tpu_custom_call.1} parent=1 // pred_check
      _
    $region35: #{tpu_custom_call.1} parent=1 // pred_check_branch
      %61 = sbr.rel (0) target = $region37
    $region36: #{tpu_custom_call.1} parent=1 // pred_region
      %62 = dma.done [#allocation6], 1024
    $region37: #{tpu_custom_call.1} parent=1 // pred_fallthru
      _
    // Predicated region
    $region38: #{tpu_custom_call.1} parent=1 // pred_check
      _
    $region39: #{tpu_custom_call.1} parent=1 // pred_check_branch
      %64 = sbr.rel (0) target = $region41
    $region40: #{tpu_custom_call.1} parent=1 // pred_region
      %65 = dma.done [#allocation6], 8192
    $region41: #{tpu_custom_call.1} parent=1 // pred_fallthru
      _
    %v67 = vld [vmem:[#allocation3] sm:$0xf]
    %v68 = vld [vmem:[#allocation5] sm:$0xff]
    %v69 = vld [vmem:[#allocation5 + $0x8] sm:$0xff]
    %v70 = vld [vmem:[#allocation5 + $0x10] sm:$0xff]
    %v71 = vld [vmem:[#allocation5 + $0x18] sm:$0xff]
    %v72 = vld [vmem:[#allocation5 + $0x20] sm:$0xff]
    %v73 = vld [vmem:[#allocation5 + $0x28] sm:$0xff]
    %v74 = vld [vmem:[#allocation5 + $0x30] sm:$0xff]
    %v75 = vld [vmem:[#allocation5 + $0x38] sm:$0xff]
    %v76 = vld [vmem:[%s2] sm:$0xf]
    %v78 = vlaneseq
    %v79 = vshrl.u32 %v78, 7
    %v80 = vsub.s32 0, %v79
    %v81 = vrot.slane %v76, %v80
    %v82 = vlaneseq
    %v83 = vshrl.u32 %v82, 7
    %v84 = vsub.s32 1, %v83
    %v85 = vrot.slane %v76, %v84
    %v86 = vlaneseq
    %v87 = vshrl.u32 %v86, 7
    %v88 = vsub.s32 2, %v87
    %v89 = vrot.slane %v76, %v88
    %v90 = vlaneseq
    %v91 = vshrl.u32 %v90, 7
    %v92 = vsub.s32 3, %v91
    %v93 = vrot.slane %v76, %v92
    %v106 = vunpack.c.l.b16 %v68
    %v107 = vunpack.c.h.b16 %v68
    %v108 = vunpack.c.l.b16 %v69
    %v109 = vunpack.c.h.b16 %v69
    %v110 = vunpack.c.l.b16 %v70
    %v111 = vunpack.c.h.b16 %v70
    %v112 = vunpack.c.l.b16 %v71
    %v113 = vunpack.c.h.b16 %v71
    %v114 = vunpack.c.l.b16 %v72
    %v115 = vunpack.c.h.b16 %v72
    %v116 = vunpack.c.l.b16 %v73
    %v117 = vunpack.c.h.b16 %v73
    %v118 = vunpack.c.l.b16 %v74
    %v119 = vunpack.c.h.b16 %v74
    %v120 = vunpack.c.l.b16 %v75
    %v121 = vunpack.c.h.b16 %v75
    %v122 = vpack.c.b16 %v110, %v106
    %v123 = vpack.c.b16 %v111, %v107
    %v124 = vpack.c.b16 %v112, %v108
    %v125 = vpack.c.b16 %v113, %v109
    %v126 = vpack.c.b16 %v118, %v114
    %v127 = vpack.c.b16 %v119, %v115
    %v128 = vpack.c.b16 %v120, %v116
    %v129 = vpack.c.b16 %v121, %v117
    %vm138 = vcmask 261120
    %v140 = vsel %vm138, %v67, 0
    %142 = vmatprep.subr.bf16.mxu0 0
    %143 = vmatpush1.bf16.msra.mxu0 0
    %144 = vmatprep.subr.bf16.mxu0 0
    %145 = vmatpush1.bf16.msra.mxu0 0
    %146 = vmatprep.subr.bf16.mxu0 0
    %147 = vmatpush1.bf16.msra.mxu0 0
    %148 = vmatprep.subr.bf16.mxu0 0
    %149 = vmatpush1.bf16.msra.mxu0 0
    %150 = vmatprep.subr.bf16.mxu0 0
    %151 = vmatpush1.bf16.msra.mxu0 0
    %152 = vmatprep.subr.bf16.mxu0 0
    %153 = vmatpush1.bf16.msra.mxu0 0
    %154 = vmatprep.subr.bf16.mxu0 %v127
    %155 = vmatpush1.bf16.msra.mxu0 %v126
    %156 = vmatprep.subr.bf16.mxu0 %v123
    %157 = vmatpush1.bf16.msra.mxu0 %v122
    %158 = vmatprep.subr.bf16.mxu0 0
    %159 = vmatpush2.bf16.msra.mxu0 0
    %160 = vmatprep.subr.bf16.mxu0 0
    %161 = vmatpush2.bf16.msra.mxu0 0
    %162 = vmatprep.subr.bf16.mxu0 0
    %163 = vmatpush2.bf16.msra.mxu0 0
    %164 = vmatprep.subr.bf16.mxu0 0
    %165 = vmatpush2.bf16.msra.mxu0 0
    %166 = vmatprep.subr.bf16.mxu0 0
    %167 = vmatpush2.bf16.msra.mxu0 0
    %168 = vmatprep.subr.bf16.mxu0 0
    %169 = vmatpush2.bf16.msra.mxu0 0
    %170 = vmatprep.subr.bf16.mxu0 0
    %171 = vmatpush2.bf16.msra.mxu0 0
    %172 = vmatprep.subr.bf16.mxu0 0
    %173 = vmatpush2.bf16.msra.mxu0 0
    %174 = vmatprep.mubr.bf16.mxu0 0
    %175 = vmatmul.mubr.bf16.gmra.mxu0 %v140
    %v176 = vpop.f32.mrf.mxu0
    %v177 = vadd.f32 %v81, %v176
    %v178 = vpop.f32.mrf.mxu0
    %v179 = vadd.f32 %v85, %v178
    %v180 = vpop.f32.mrf.mxu0
    %v181 = vpop.f32.mrf.mxu0
    %182 = vdwg.mxu0
    %183 = vmatprep.subr.bf16.mxu0 0
    %184 = vmatpush1.bf16.msra.mxu0 0
    %185 = vmatprep.subr.bf16.mxu0 0
    %186 = vmatpush1.bf16.msra.mxu0 0
    %187 = vmatprep.subr.bf16.mxu0 0
    %188 = vmatpush1.bf16.msra.mxu0 0
    %189 = vmatprep.subr.bf16.mxu0 0
    %190 = vmatpush1.bf16.msra.mxu0 0
    %191 = vmatprep.subr.bf16.mxu0 0
    %192 = vmatpush1.bf16.msra.mxu0 0
    %193 = vmatprep.subr.bf16.mxu0 0
    %194 = vmatpush1.bf16.msra.mxu0 0
    %195 = vmatprep.subr.bf16.mxu0 %v129
    %196 = vmatpush1.bf16.msra.mxu0 %v128
    %197 = vmatprep.subr.bf16.mxu0 %v125
    %198 = vmatpush1.bf16.msra.mxu0 %v124
    %199 = vmatprep.subr.bf16.mxu0 0
    %200 = vmatpush2.bf16.msra.mxu0 0
    %201 = vmatprep.subr.bf16.mxu0 0
    %202 = vmatpush2.bf16.msra.mxu0 0
    %203 = vmatprep.subr.bf16.mxu0 0
    %204 = vmatpush2.bf16.msra.mxu0 0
    %205 = vmatprep.subr.bf16.mxu0 0
    %206 = vmatpush2.bf16.msra.mxu0 0
    %207 = vmatprep.subr.bf16.mxu0 0
    %208 = vmatpush2.bf16.msra.mxu0 0
    %209 = vmatprep.subr.bf16.mxu0 0
    %210 = vmatpush2.bf16.msra.mxu0 0
    %211 = vmatprep.subr.bf16.mxu0 0
    %212 = vmatpush2.bf16.msra.mxu0 0
    %213 = vmatprep.subr.bf16.mxu0 0
    %214 = vmatpush2.bf16.msra.mxu0 0
    %215 = vmatprep.mubr.bf16.mxu0 0
    %216 = vmatmul.mubr.bf16.gmra.mxu0 %v140
    %v217 = vpop.f32.mrf.mxu0
    %v218 = vadd.f32 %v89, %v217
    %v219 = vpop.f32.mrf.mxu0
    %v220 = vadd.f32 %v93, %v219
    %v221 = vpop.f32.mrf.mxu0
    %v222 = vpop.f32.mrf.mxu0
    %223 = vdwg.mxu0
    %v224 = vmul.f32 %v177, 0.5
    %v225 = vmul.f32 %v179, 0.5
    %v226 = vmul.f32 %v218, 0.5
    %v227 = vmul.f32 %v220, 0.5
    %v228 = vtanh.pop %v224
    %v229 = vtanh.pop %v225
    %v230 = vtanh.pop %v226
    %v231 = vtanh.pop %v227
    %v232 = vmul.f32 %v228, 0.5
    %v233 = vmul.f32 %v229, 0.5
    %v234 = vmul.f32 %v230, 0.5
    %v235 = vmul.f32 %v231, 0.5
    %v236 = vadd.f32 %v232, 0.5
    %v237 = vadd.f32 %v233, 0.5
    %v238 = vadd.f32 %v234, 0.5
    %v239 = vadd.f32 %v235, 0.5
    %v240 = vpack.c.bf16 %v236, %v236
    %v241 = vpack.c.bf16 %v237, %v237
    %v242 = vpack.c.bf16 %v238, %v238
    %v243 = vpack.c.bf16 %v239, %v239
    %v244 = vld [vmem:[#allocation7] sm:$0xff]
    %v245 = vld [vmem:[#allocation7 + $0x8] sm:$0xff]
    %v246 = vld [vmem:[#allocation7 + $0x10] sm:$0xff]
    %v247 = vld [vmem:[#allocation7 + $0x18] sm:$0xff]
    %v248 = vld [vmem:[#allocation7 + $0x20] sm:$0xff]
    %v249 = vld [vmem:[#allocation7 + $0x28] sm:$0xff]
    %v250 = vld [vmem:[#allocation7 + $0x30] sm:$0xff]
    %v251 = vld [vmem:[#allocation7 + $0x38] sm:$0xff]
    %v252 = vld [vmem:[#allocation7 + $0x40] sm:$0xff]
    %v253 = vld [vmem:[#allocation7 + $0x48] sm:$0xff]
    %v254 = vld [vmem:[#allocation7 + $0x50] sm:$0xff]
    %v255 = vld [vmem:[#allocation7 + $0x58] sm:$0xff]
    %v256 = vld [vmem:[#allocation7 + $0x60] sm:$0xff]
    %v257 = vld [vmem:[#allocation7 + $0x68] sm:$0xff]
    %v258 = vld [vmem:[#allocation7 + $0x70] sm:$0xff]
    %v259 = vld [vmem:[#allocation7 + $0x78] sm:$0xff]
    %v260 = vld [vmem:[#allocation7 + $0x80] sm:$0xff]
    %v261 = vld [vmem:[#allocation7 + $0x88] sm:$0xff]
    %v262 = vld [vmem:[#allocation7 + $0x90] sm:$0xff]
    %v263 = vld [vmem:[#allocation7 + $0x98] sm:$0xff]
    %v264 = vld [vmem:[#allocation7 + $0xa0] sm:$0xff]
    %v265 = vld [vmem:[#allocation7 + $0xa8] sm:$0xff]
    %v266 = vld [vmem:[#allocation7 + $0xb0] sm:$0xff]
    %v267 = vld [vmem:[#allocation7 + $0xb8] sm:$0xff]
    %v268 = vld [vmem:[#allocation7 + $0xc0] sm:$0xff]
    %v269 = vld [vmem:[#allocation7 + $0xc8] sm:$0xff]
    %v270 = vld [vmem:[#allocation7 + $0xd0] sm:$0xff]
    %v271 = vld [vmem:[#allocation7 + $0xd8] sm:$0xff]
    %v272 = vld [vmem:[#allocation7 + $0xe0] sm:$0xff]
    %v273 = vld [vmem:[#allocation7 + $0xe8] sm:$0xff]
    %v274 = vld [vmem:[#allocation7 + $0xf0] sm:$0xff]
    %v275 = vld [vmem:[#allocation7 + $0xf8] sm:$0xff]
    %v276 = vld [vmem:[#allocation7 + $0x100] sm:$0xff]
    %v277 = vld [vmem:[#allocation7 + $0x108] sm:$0xff]
    %v278 = vld [vmem:[#allocation7 + $0x110] sm:$0xff]
    %v279 = vld [vmem:[#allocation7 + $0x118] sm:$0xff]
    %v280 = vld [vmem:[#allocation7 + $0x120] sm:$0xff]
    %v281 = vld [vmem:[#allocation7 + $0x128] sm:$0xff]
    %v282 = vld [vmem:[#allocation7 + $0x130] sm:$0xff]
    %v283 = vld [vmem:[#allocation7 + $0x138] sm:$0xff]
    %v284 = vld [vmem:[#allocation7 + $0x140] sm:$0xff]
    %v285 = vld [vmem:[#allocation7 + $0x148] sm:$0xff]
    %v286 = vld [vmem:[#allocation7 + $0x150] sm:$0xff]
    %v287 = vld [vmem:[#allocation7 + $0x158] sm:$0xff]
    %v288 = vld [vmem:[#allocation7 + $0x160] sm:$0xff]
    %v289 = vld [vmem:[#allocation7 + $0x168] sm:$0xff]
    %v290 = vld [vmem:[#allocation7 + $0x170] sm:$0xff]
    %v291 = vld [vmem:[#allocation7 + $0x178] sm:$0xff]
    %v292 = vld [vmem:[#allocation7 + $0x180] sm:$0xff]
    %v293 = vld [vmem:[#allocation7 + $0x188] sm:$0xff]
    %v294 = vld [vmem:[#allocation7 + $0x190] sm:$0xff]
    %v295 = vld [vmem:[#allocation7 + $0x198] sm:$0xff]
    %v296 = vld [vmem:[#allocation7 + $0x1a0] sm:$0xff]
    %v297 = vld [vmem:[#allocation7 + $0x1a8] sm:$0xff]
    %v298 = vld [vmem:[#allocation7 + $0x1b0] sm:$0xff]
    %v299 = vld [vmem:[#allocation7 + $0x1b8] sm:$0xff]
    %v300 = vld [vmem:[#allocation7 + $0x1c0] sm:$0xff]
    %v301 = vld [vmem:[#allocation7 + $0x1c8] sm:$0xff]
    %v302 = vld [vmem:[#allocation7 + $0x1d0] sm:$0xff]
    %v303 = vld [vmem:[#allocation7 + $0x1d8] sm:$0xff]
    %v304 = vld [vmem:[#allocation7 + $0x1e0] sm:$0xff]
    %v305 = vld [vmem:[#allocation7 + $0x1e8] sm:$0xff]
    %v306 = vld [vmem:[#allocation7 + $0x1f0] sm:$0xff]
    %v307 = vld [vmem:[#allocation7 + $0x1f8] sm:$0xff]
    %v308 = vld [vmem:[%s4] sm:$0x3]
    %v310 = vlaneseq
    %v311 = vshrl.u32 %v310, 7
    %v312 = vsub.s32 0, %v311
    %v313 = vrot.slane %v308, %v312
    %v314 = vlaneseq
    %v315 = vshrl.u32 %v314, 7
    %v316 = vsub.s32 1, %v315
    %v317 = vrot.slane %v308, %v316
    %v384 = vunpack.c.l.b16 %v244
    %v385 = vunpack.c.h.b16 %v244
    %v386 = vunpack.c.l.b16 %v245
    %v387 = vunpack.c.h.b16 %v245
    %v388 = vunpack.c.l.b16 %v246
    %v389 = vunpack.c.h.b16 %v246
    %v390 = vunpack.c.l.b16 %v247
    %v391 = vunpack.c.h.b16 %v247
    %v392 = vunpack.c.l.b16 %v248
    %v393 = vunpack.c.h.b16 %v248
    %v394 = vunpack.c.l.b16 %v249
    %v395 = vunpack.c.h.b16 %v249
    %v396 = vunpack.c.l.b16 %v250
    %v397 = vunpack.c.h.b16 %v250
    %v398 = vunpack.c.l.b16 %v251
    %v399 = vunpack.c.h.b16 %v251
    %v400 = vunpack.c.l.b16 %v252
    %v401 = vunpack.c.h.b16 %v252
    %v402 = vunpack.c.l.b16 %v253
    %v403 = vunpack.c.h.b16 %v253
    %v404 = vunpack.c.l.b16 %v254
    %v405 = vunpack.c.h.b16 %v254
    %v406 = vunpack.c.l.b16 %v255
    %v407 = vunpack.c.h.b16 %v255
    %v408 = vunpack.c.l.b16 %v256
    %v409 = vunpack.c.h.b16 %v256
    %v410 = vunpack.c.l.b16 %v257
    %v411 = vunpack.c.h.b16 %v257
    %v412 = vunpack.c.l.b16 %v258
    %v413 = vunpack.c.h.b16 %v258
    %v414 = vunpack.c.l.b16 %v259
    %v415 = vunpack.c.h.b16 %v259
    %v416 = vunpack.c.l.b16 %v260
    %v417 = vunpack.c.h.b16 %v260
    %v418 = vunpack.c.l.b16 %v261
    %v419 = vunpack.c.h.b16 %v261
    %v420 = vunpack.c.l.b16 %v262
    %v421 = vunpack.c.h.b16 %v262
    %v422 = vunpack.c.l.b16 %v263
    %v423 = vunpack.c.h.b16 %v263
    %v424 = vunpack.c.l.b16 %v264
    %v425 = vunpack.c.h.b16 %v264
    %v426 = vunpack.c.l.b16 %v265
    %v427 = vunpack.c.h.b16 %v265
    %v428 = vunpack.c.l.b16 %v266
    %v429 = vunpack.c.h.b16 %v266
    %v430 = vunpack.c.l.b16 %v267
    %v431 = vunpack.c.h.b16 %v267
    %v432 = vunpack.c.l.b16 %v268
    %v433 = vunpack.c.h.b16 %v268
    %v434 = vunpack.c.l.b16 %v269
    %v435 = vunpack.c.h.b16 %v269
    %v436 = vunpack.c.l.b16 %v270
    %v437 = vunpack.c.h.b16 %v270
    %v438 = vunpack.c.l.b16 %v271
    %v439 = vunpack.c.h.b16 %v271
    %v440 = vunpack.c.l.b16 %v272
    %v441 = vunpack.c.h.b16 %v272
    %v442 = vunpack.c.l.b16 %v273
    %v443 = vunpack.c.h.b16 %v273
    %v444 = vunpack.c.l.b16 %v274
    %v445 = vunpack.c.h.b16 %v274
    %v446 = vunpack.c.l.b16 %v275
    %v447 = vunpack.c.h.b16 %v275
    %v448 = vunpack.c.l.b16 %v276
    %v449 = vunpack.c.h.b16 %v276
    %v450 = vunpack.c.l.b16 %v277
    %v451 = vunpack.c.h.b16 %v277
    %v452 = vunpack.c.l.b16 %v278
    %v453 = vunpack.c.h.b16 %v278
    %v454 = vunpack.c.l.b16 %v279
    %v455 = vunpack.c.h.b16 %v279
    %v456 = vunpack.c.l.b16 %v280
    %v457 = vunpack.c.h.b16 %v280
    %v458 = vunpack.c.l.b16 %v281
    %v459 = vunpack.c.h.b16 %v281
    %v460 = vunpack.c.l.b16 %v282
    %v461 = vunpack.c.h.b16 %v282
    %v462 = vunpack.c.l.b16 %v283
    %v463 = vunpack.c.h.b16 %v283
    %v464 = vunpack.c.l.b16 %v284
    %v465 = vunpack.c.h.b16 %v284
    %v466 = vunpack.c.l.b16 %v285
    %v467 = vunpack.c.h.b16 %v285
    %v468 = vunpack.c.l.b16 %v286
    %v469 = vunpack.c.h.b16 %v286
    %v470 = vunpack.c.l.b16 %v287
    %v471 = vunpack.c.h.b16 %v287
    %v472 = vunpack.c.l.b16 %v288
    %v473 = vunpack.c.h.b16 %v288
    %v474 = vunpack.c.l.b16 %v289
    %v475 = vunpack.c.h.b16 %v289
    %v476 = vunpack.c.l.b16 %v290
    %v477 = vunpack.c.h.b16 %v290
    %v478 = vunpack.c.l.b16 %v291
    %v479 = vunpack.c.h.b16 %v291
    %v480 = vunpack.c.l.b16 %v292
    %v481 = vunpack.c.h.b16 %v292
    %v482 = vunpack.c.l.b16 %v293
    %v483 = vunpack.c.h.b16 %v293
    %v484 = vunpack.c.l.b16 %v294
    %v485 = vunpack.c.h.b16 %v294
    %v486 = vunpack.c.l.b16 %v295
    %v487 = vunpack.c.h.b16 %v295
    %v488 = vunpack.c.l.b16 %v296
    %v489 = vunpack.c.h.b16 %v296
    %v490 = vunpack.c.l.b16 %v297
    %v491 = vunpack.c.h.b16 %v297
    %v492 = vunpack.c.l.b16 %v298
    %v493 = vunpack.c.h.b16 %v298
    %v494 = vunpack.c.l.b16 %v299
    %v495 = vunpack.c.h.b16 %v299
    %v496 = vunpack.c.l.b16 %v300
    %v497 = vunpack.c.h.b16 %v300
    %v498 = vunpack.c.l.b16 %v301
    %v499 = vunpack.c.h.b16 %v301
    %v500 = vunpack.c.l.b16 %v302
    %v501 = vunpack.c.h.b16 %v302
    %v502 = vunpack.c.l.b16 %v303
    %v503 = vunpack.c.h.b16 %v303
    %v504 = vunpack.c.l.b16 %v304
    %v505 = vunpack.c.h.b16 %v304
    %v506 = vunpack.c.l.b16 %v305
    %v507 = vunpack.c.h.b16 %v305
    %v508 = vunpack.c.l.b16 %v306
    %v509 = vunpack.c.h.b16 %v306
    %v510 = vunpack.c.l.b16 %v307
    %v511 = vunpack.c.h.b16 %v307
    %v512 = vpack.c.b16 %v386, %v384
    %v513 = vpack.c.b16 %v387, %v385
    %v514 = vpack.c.b16 %v390, %v388
    %v515 = vpack.c.b16 %v391, %v389
    %v516 = vpack.c.b16 %v394, %v392
    %v517 = vpack.c.b16 %v395, %v393
    %v518 = vpack.c.b16 %v398, %v396
    %v519 = vpack.c.b16 %v399, %v397
    %v520 = vpack.c.b16 %v402, %v400
    %v521 = vpack.c.b16 %v403, %v401
    %v522 = vpack.c.b16 %v406, %v404
    %v523 = vpack.c.b16 %v407, %v405
    %v524 = vpack.c.b16 %v410, %v408
    %v525 = vpack.c.b16 %v411, %v409
    %v526 = vpack.c.b16 %v414, %v412
    %v527 = vpack.c.b16 %v415, %v413
    %v528 = vpack.c.b16 %v418, %v416
    %v529 = vpack.c.b16 %v419, %v417
    %v530 = vpack.c.b16 %v422, %v420
    %v531 = vpack.c.b16 %v423, %v421
    %v532 = vpack.c.b16 %v426, %v424
    %v533 = vpack.c.b16 %v427, %v425
    %v534 = vpack.c.b16 %v430, %v428
    %v535 = vpack.c.b16 %v431, %v429
    %v536 = vpack.c.b16 %v434, %v432
    %v537 = vpack.c.b16 %v435, %v433
    %v538 = vpack.c.b16 %v438, %v436
    %v539 = vpack.c.b16 %v439, %v437
    %v540 = vpack.c.b16 %v442, %v440
    %v541 = vpack.c.b16 %v443, %v441
    %v542 = vpack.c.b16 %v446, %v444
    %v543 = vpack.c.b16 %v447, %v445
    %v544 = vpack.c.b16 %v450, %v448
    %v545 = vpack.c.b16 %v451, %v449
    %v546 = vpack.c.b16 %v454, %v452
    %v547 = vpack.c.b16 %v455, %v453
    %v548 = vpack.c.b16 %v458, %v456
    %v549 = vpack.c.b16 %v459, %v457
    %v550 = vpack.c.b16 %v462, %v460
    %v551 = vpack.c.b16 %v463, %v461
    %v552 = vpack.c.b16 %v466, %v464
    %v553 = vpack.c.b16 %v467, %v465
    %v554 = vpack.c.b16 %v470, %v468
    %v555 = vpack.c.b16 %v471, %v469
    %v556 = vpack.c.b16 %v474, %v472
    %v557 = vpack.c.b16 %v475, %v473
    %v558 = vpack.c.b16 %v478, %v476
    %v559 = vpack.c.b16 %v479, %v477
    %v560 = vpack.c.b16 %v482, %v480
    %v561 = vpack.c.b16 %v483, %v481
    %v562 = vpack.c.b16 %v486, %v484
    %v563 = vpack.c.b16 %v487, %v485
    %v564 = vpack.c.b16 %v490, %v488
    %v565 = vpack.c.b16 %v491, %v489
    %v566 = vpack.c.b16 %v494, %v492
    %v567 = vpack.c.b16 %v495, %v493
    %v568 = vpack.c.b16 %v498, %v496
    %v569 = vpack.c.b16 %v499, %v497
    %v570 = vpack.c.b16 %v502, %v500
    %v571 = vpack.c.b16 %v503, %v501
    %v572 = vpack.c.b16 %v506, %v504
    %v573 = vpack.c.b16 %v507, %v505
    %v574 = vpack.c.b16 %v510, %v508
    %v575 = vpack.c.b16 %v511, %v509
    %640 = vmatprep.subr.bf16.mxu0 %v527
    %641 = vmatpush1.bf16.msra.mxu0 %v526
    %642 = vmatprep.subr.bf16.mxu0 %v525
    %643 = vmatpush1.bf16.msra.mxu0 %v524
    %644 = vmatprep.subr.bf16.mxu0 %v523
    %645 = vmatpush1.bf16.msra.mxu0 %v522
    %646 = vmatprep.subr.bf16.mxu0 %v521
    %647 = vmatpush1.bf16.msra.mxu0 %v520
    %648 = vmatprep.subr.bf16.mxu0 %v519
    %649 = vmatpush1.bf16.msra.mxu0 %v518
    %650 = vmatprep.subr.bf16.mxu0 %v517
    %651 = vmatpush1.bf16.msra.mxu0 %v516
    %652 = vmatprep.subr.bf16.mxu0 %v515
    %653 = vmatpush1.bf16.msra.mxu0 %v514
    %654 = vmatprep.subr.bf16.mxu0 %v513
    %655 = vmatpush1.bf16.msra.mxu0 %v512
    %656 = vmatprep.subr.bf16.mxu0 %v543
    %657 = vmatpush2.bf16.msra.mxu0 %v542
    %658 = vmatprep.subr.bf16.mxu0 %v541
    %659 = vmatpush2.bf16.msra.mxu0 %v540
    %660 = vmatprep.subr.bf16.mxu0 %v539
    %661 = vmatpush2.bf16.msra.mxu0 %v538
    %662 = vmatprep.subr.bf16.mxu0 %v537
    %663 = vmatpush2.bf16.msra.mxu0 %v536
    %664 = vmatprep.subr.bf16.mxu0 %v535
    %665 = vmatpush2.bf16.msra.mxu0 %v534
    %666 = vmatprep.subr.bf16.mxu0 %v533
    %667 = vmatpush2.bf16.msra.mxu0 %v532
    %668 = vmatprep.subr.bf16.mxu0 %v531
    %669 = vmatpush2.bf16.msra.mxu0 %v530
    %670 = vmatprep.subr.bf16.mxu0 %v529
    %671 = vmatpush2.bf16.msra.mxu0 %v528
    %672 = vmatprep.mubr.bf16.mxu0 %v241
    %673 = vmatmul.mubr.bf16.gmra.mxu0 %v240
    %v674 = vpop.f32.mrf.mxu0
    %v675 = vadd.f32 %v313, %v674
    %v676 = vpop.f32.mrf.mxu0
    %v677 = vadd.f32 %v317, %v676
    %v678 = vpop.f32.mrf.mxu0
    %v679 = vpop.f32.mrf.mxu0
    %680 = vdwg.mxu0
    %681 = vmatprep.subr.bf16.mxu0 %v559
    %682 = vmatpush1.bf16.msra.mxu0 %v558
    %683 = vmatprep.subr.bf16.mxu0 %v557
    %684 = vmatpush1.bf16.msra.mxu0 %v556
    %685 = vmatprep.subr.bf16.mxu0 %v555
    %686 = vmatpush1.bf16.msra.mxu0 %v554
    %687 = vmatprep.subr.bf16.mxu0 %v553
    %688 = vmatpush1.bf16.msra.mxu0 %v552
    %689 = vmatprep.subr.bf16.mxu0 %v551
    %690 = vmatpush1.bf16.msra.mxu0 %v550
    %691 = vmatprep.subr.bf16.mxu0 %v549
    %692 = vmatpush1.bf16.msra.mxu0 %v548
    %693 = vmatprep.subr.bf16.mxu0 %v547
    %694 = vmatpush1.bf16.msra.mxu0 %v546
    %695 = vmatprep.subr.bf16.mxu0 %v545
    %696 = vmatpush1.bf16.msra.mxu0 %v544
    %697 = vmatprep.subr.bf16.mxu0 %v575
    %698 = vmatpush2.bf16.msra.mxu0 %v574
    %699 = vmatprep.subr.bf16.mxu0 %v573
    %700 = vmatpush2.bf16.msra.mxu0 %v572
    %701 = vmatprep.subr.bf16.mxu0 %v571
    %702 = vmatpush2.bf16.msra.mxu0 %v570
    %703 = vmatprep.subr.bf16.mxu0 %v569
    %704 = vmatpush2.bf16.msra.mxu0 %v568
    %705 = vmatprep.subr.bf16.mxu0 %v567
    %706 = vmatpush2.bf16.msra.mxu0 %v566
    %707 = vmatprep.subr.bf16.mxu0 %v565
    %708 = vmatpush2.bf16.msra.mxu0 %v564
    %709 = vmatprep.subr.bf16.mxu0 %v563
    %710 = vmatpush2.bf16.msra.mxu0 %v562
    %711 = vmatprep.subr.bf16.mxu0 %v561
    %712 = vmatpush2.bf16.msra.mxu0 %v560
    %713 = vmatprep.mubr.bf16.mxu0 %v243
    %714 = vmatmul.mubr.bf16.gmra.mxu0 %v242
    %v715 = vpop.f32.mrf.mxu0
    %v716 = vadd.f32 %v675, %v715
    %v717 = vpop.f32.mrf.mxu0
    %v718 = vadd.f32 %v677, %v717
    %v719 = vpop.f32.mrf.mxu0
    %v720 = vpop.f32.mrf.mxu0
    %721 = vdwg.mxu0
    %v722 = vmul.f32 %v716, 0.5
    %v723 = vmul.f32 %v718, 0.5
    %v724 = vtanh.pop %v722
    %v725 = vtanh.pop %v723
    %v726 = vmul.f32 %v724, 0.5
    %v727 = vmul.f32 %v725, 0.5
    %v728 = vadd.f32 %v726, 0.5
    %v729 = vadd.f32 %v727, 0.5
    %v730 = vld [vmem:[%s5] sm:$0x3]
    %v732 = vlaneseq
    %v733 = vshrl.u32 %v732, 7
    %v734 = vsub.s32 0, %v733
    %v735 = vrot.slane %v730, %v734
    %v736 = vlaneseq
    %v737 = vshrl.u32 %v736, 7
    %v738 = vsub.s32 1, %v737
    %v739 = vrot.slane %v730, %v738
    %v742 = vmul.f32 %v728, %v735
    %v743 = vmul.f32 %v729, %v739
    %v744 = vadd.f32 %v742, %v743
    %745 = vadd.xlane.f32.xlu0 %v744
    %v746 = vpop.xlane.xlu0 %745
    %s747 = sld [smem:[#allocation2]]
    %v748 = vstv %s747
    %v749 = vadd.f32 %v746, %v748
    %v750 = vmul.f32 %v749, 0.5
    %v751 = vtanh.pop %v750
    %v752 = vmul.f32 %v751, 0.5
    %v753 = vadd.f32 %v752, 0.5
    %vm754 = vcmask 7168
    %755 = vst.msk [vmem:[%s7] sm:$0xff] %vm754, %v753
    // Predicated region
    $region42: #{tpu_custom_call.1} parent=1 // pred_check
      _
    $region43: #{tpu_custom_call.1} parent=1 // pred_check_branch
      %757 = sbr.rel (0) target = $region45
    $region44: #{tpu_custom_call.1} parent=1 // pred_region
      _
    $region45: #{tpu_custom_call.1} parent=1 // pred_fallthru
      _
    // Predicated region
    $region46: #{tpu_custom_call.1} parent=1 // pred_check
      _
    $region47: #{tpu_custom_call.1} parent=1 // pred_check_branch
      %759 = sbr.rel (0) target = $region49
    $region48: #{tpu_custom_call.1} parent=1 // pred_region
      _
    $region49: #{tpu_custom_call.1} parent=1 // pred_fallthru
      _
    %760 = vsyncpa [#allocation4], 1
    %761 = vsyncpa [#allocation6], 1

</llo_original>
